<compile_context>
chip_gen: v7x
topology: tpu7x:2x2x1
jax: 0.10.0
libtpu: 0.0.40
codegen_flags: <defaults>
</compile_context>

<pallas_src>
import functools

import jax
import jax.numpy as jnp
from jax.experimental import pallas as pl
from jax.experimental.pallas import tpu as pltpu


# ----------------------------------------------------------------------------
# Generation-aware budgets
# ----------------------------------------------------------------------------
def _tpu_budgets(itemsize: int):
    """Return (vmem_limit_bytes, per-block byte budget for a resident slab)."""
    try:
        cap = int(getattr(pltpu.get_tpu_info(), "vmem_capacity_bytes", 64 << 20))
    except Exception:  # pragma: no cover - e.g. interpret mode / CPU
        cap = 64 << 20
    cap = min(max(cap, 32 << 20), 128 << 20)
    vmem_limit = (cap * 3) // 4          # ~96 MiB on v5e/v6e, ~48 MiB on v7x
    # budget math: double-buffered input + output (4 blocks) + ~2 f32 temps
    n_blocks = 4 + 2 * max(1, 4 // max(1, itemsize))   # f32: 6, bf16: 8, i8: 12
    block_budget = vmem_limit // n_blocks
    return vmem_limit, block_budget


# ----------------------------------------------------------------------------
# Fused path: whole (bB, S, H) slab resident (small / medium shapes).
# One HBM read + one HBM write of x.
# ----------------------------------------------------------------------------
def _fused_kernel(alpha_ref, bias_ref, x_ref, o_ref, *, eps: float, seq: int):
    x = x_ref[...].astype(jnp.float32)                     # (bB, S, H)

    # mean over hidden (last dim), per row
    mean_h = jnp.mean(x, axis=-1, keepdims=True)           # (bB, S, 1)

    # numerically stable two-pass unbiased variance over the seq axis (dim=1)
    mu1 = jnp.mean(x, axis=1, keepdims=True)               # (bB, 1, H)
    d = x - mu1
    var = jnp.sum(d * d, axis=1, keepdims=True) / float(seq - 1)
    denom = jnp.sqrt(var) + eps                            # eps added to STD (torch)

    # EUP reciprocal + two Newton steps -> full f32 accuracy, no per-elem divide
    inv = pl.reciprocal(denom, approx=True)
    inv = inv * (2.0 - denom * inv)
    inv = inv * (2.0 - denom * inv)

    scale = alpha_ref[0] * inv                             # (bB, 1, H), hoisted
    o_ref[...] = ((x - mean_h) * scale + bias_ref[0]).astype(o_ref.dtype)


def _fused_forward(x, alpha, bias, eps, vmem_limit, block_budget):
    B, S, H = x.shape
    row_bytes = S * H * x.dtype.itemsize

    # Largest batch chunk (divisor of B) fitting the budget, but keep >= 2
    # (ideally >= 4) grid steps when B > 1 so the software pipeline can
    # overlap DMA with compute and v7x shards the parallel axis across cores.
    if B >= 4:
        cap = max(1, B // 4)
    elif B >= 2:
        cap = max(1, B // 2)
    else:
        cap = 1
    bB = 1
    for cand in range(min(B, cap), 0, -1):
        if B % cand == 0 and cand * row_bytes <= block_budget:
            bB = cand
            break
    grid = (B // bB,)

    return pl.pallas_call(
        functools.partial(_fused_kernel, eps=eps, seq=S),
        out_shape=jax.ShapeDtypeStruct((B, S, H), x.dtype),
        grid=grid,
        in_specs=[
            pl.BlockSpec(memory_space=pltpu.MemorySpace.SMEM),      # alpha
            pl.BlockSpec(memory_space=pltpu.MemorySpace.SMEM),      # bias
            pl.BlockSpec((bB, S, H), lambda i: (i, 0, 0)),          # x
        ],
        out_specs=pl.BlockSpec((bB, S, H), lambda i: (i, 0, 0)),
        compiler_params=pltpu.CompilerParams(
            dimension_semantics=("parallel",),
            vmem_limit_bytes=vmem_limit,
        ),
    )(alpha, bias, x)


# ----------------------------------------------------------------------------
# Streamed path for large (S, H): single pallas_call with a phase axis.
#   grid = (B, 2, nS);  phase 0 = column stats, phase 1 = apply.
# The per-batch scale lives in VMEM scratch between the two phases; the only
# HBM traffic is 2 reads + 1 write of x.
# ----------------------------------------------------------------------------
def _streamed_kernel(alpha_ref, bias_ref, x_ref, o_ref,
                     shift_sc, sum_sc, sumsq_sc, scale_sc,
                     *, eps: float, seq: int, tile_s: int, needs_mask: bool):
    p = pl.program_id(1)                 # 0 = stats pass, 1 = apply pass
    s = pl.program_id(2)
    x = x_ref[0].astype(jnp.float32)     # (tS, H)

    @pl.when(p == 0)
    def _stats():
        @pl.when(s == 0)
        def _():
            # per-column shift (first row) -> avoids E[x^2]-E[x]^2 cancellation
            shift_sc[...] = x[0:1, :]
            sum_sc[...] = jnp.zeros_like(sum_sc)
            sumsq_sc[...] = jnp.zeros_like(sumsq_sc)

        xd = x - shift_sc[...]
        if needs_mask:
            row = jax.lax.broadcasted_iota(jnp.int32, (tile_s, 1), 0)
            xd = jnp.where(s * tile_s + row < seq, xd, 0.0)

        sum_sc[...] += jnp.sum(xd, axis=0, keepdims=True)       # (1, H)
        sumsq_sc[...] += jnp.sum(xd * xd, axis=0, keepdims=True)

        @pl.when(s == pl.num_programs(2) - 1)
        def _():
            n = float(seq)
            var = (sumsq_sc[...] - sum_sc[...] * sum_sc[...] / n) / (n - 1.0)
            var = jnp.maximum(var, 0.0)
            denom = jnp.sqrt(var) + eps
            inv = pl.reciprocal(denom, approx=True)
            inv = inv * (2.0 - denom * inv)
            inv = inv * (2.0 - denom * inv)
            scale_sc[...] = alpha_ref[0] * inv                   # alpha folded in

    @pl.when(p == 1)
    def _apply():
        # mean over hidden recomputed here (cheap XLU reduce on resident data)
        mean_h = jnp.mean(x, axis=-1, keepdims=True)             # (tS, 1)
        o_ref[0] = ((x - mean_h) * scale_sc[...] + bias_ref[0]).astype(o_ref.dtype)


def _choose_seq_tile(S: int, h_row_bytes: int, budget: int, sub: int) -> int:
    """Seq tile: a multiple of `sub` within the byte budget; prefer a divisor
    of S so the cdiv grid needs no boundary masking."""
    if S * h_row_bytes <= budget:
        return S
    max_rows = max(sub, (budget // max(1, h_row_bytes)) // sub * sub)
    t = max_rows
    while t >= sub:
        if S % t == 0:
            return t
        t -= sub
    return max_rows      # no clean divisor: cdiv grid + masked final tile


def _streamed_forward(x, alpha, bias, eps, vmem_limit, block_budget):
    B, S, H = x.shape
    itemsize = x.dtype.itemsize
    sub = max(8, 32 // itemsize)              # sublane packing: f32 8, bf16 16, i8 32
    tS = _choose_seq_tile(S, H * itemsize, block_budget, sub)
    nS = pl.cdiv(S, tS)
    needs_mask = (S % tS) != 0

    return pl.pallas_call(
        functools.partial(_streamed_kernel, eps=eps, seq=S, tile_s=tS,
                          needs_mask=needs_mask),
        out_shape=jax.ShapeDtypeStruct((B, S, H), x.dtype),
        grid=(B, 2, nS),
        in_specs=[
            pl.BlockSpec(memory_space=pltpu.MemorySpace.SMEM),        # alpha
            pl.BlockSpec(memory_space=pltpu.MemorySpace.SMEM),        # bias
            pl.BlockSpec((1, tS, H), lambda b, p, s: (b, s, 0)),      # x
        ],
        # phase 0 pins the output at block (b, 0) (index unchanged -> never
        # flushed); phase 1 writes real data and each block flushes exactly
        # once when the index advances.
        out_specs=pl.BlockSpec((1, tS, H), lambda b, p, s: (b, s * p, 0)),
        scratch_shapes=[
            pltpu.VMEM((1, H), jnp.float32),   # shift (first-row estimate)
            pltpu.VMEM((1, H), jnp.float32),   # sum(x - shift) over seq
            pltpu.VMEM((1, H), jnp.float32),   # sum((x - shift)^2) over seq
            pltpu.VMEM((1, H), jnp.float32),   # scale = alpha / (std + eps)
        ],
        compiler_params=pltpu.CompilerParams(
            dimension_semantics=("parallel", "arbitrary", "arbitrary"),
            vmem_limit_bytes=vmem_limit,
        ),
    )(alpha, bias, x)


# ----------------------------------------------------------------------------
# Public wrappers
# ----------------------------------------------------------------------------
def layer_normalization(x, alpha, bias, eps: float = 1e-5, *,
                        force_streamed: bool = False):
    """Pallas TPU implementation of the PyTorch LayerNormalization module.

    x:     (B, S, H) float array
    alpha: (1,) scalar gain parameter
    bias:  (1,) scalar bias parameter
    """
    B, S, H = x.shape
    # NOTE: H is ideally a multiple of 128 for lane-dense stores; small H
    # (demo = 32) still works but uses masked stores.
    alpha = jnp.asarray(alpha, jnp.float32).reshape(1)
    bias = jnp.asarray(bias, jnp.float32).reshape(1)

    vmem_limit, block_budget = _tpu_budgets(x.dtype.itemsize)
    row_bytes = S * H * x.dtype.itemsize
    if force_streamed or row_bytes > block_budget:
        return _streamed_forward(x, alpha, bias, eps, vmem_limit, block_budget)
    return _fused_forward(x, alpha, bias, eps, vmem_limit, block_budget)


def encoder_forward(x, mask, layers=(), alpha=None, bias=None, eps: float = 1e-5):
    """Encoder.forward: apply the (external) layers, then the Pallas LayerNorm."""
    # TODO(synk): the encoder's nn.ModuleList layers are opaque user modules;
    # they are applied here as JAX callables `layer(x, mask) -> x` outside the kernel.
    for layer in layers:
        x = layer(x, mask)
    if alpha is None:
        alpha = jnp.ones((1,), jnp.float32)
    if bias is None:
        bias = jnp.zeros((1,), jnp.float32)
    return layer_normalization(x, alpha, bias, eps)


# ----------------------------------------------------------------------------
# Reference + demo
# ----------------------------------------------------------------------------
def _reference(x, alpha, bias, eps=1e-5):
    x32 = x.astype(jnp.float32)
    mean = jnp.mean(x32, axis=-1, keepdims=True)
    mu1 = jnp.mean(x32, axis=1, keepdims=True)
    var = jnp.sum((x32 - mu1) ** 2, axis=1, keepdims=True) / (x.shape[1] - 1)
    std = jnp.sqrt(var)
    return (alpha[0] * (x32 - mean) / (std + eps) + bias[0]).astype(x.dtype)


if __name__ == "__main__":
    key = jax.random.PRNGKey(0)
    B, S, H = 2, 8, 32
    x = jax.random.normal(key, (B, S, H), dtype=jnp.float32)

    # Deterministic parameter init matching nn.Parameter(ones(1)) / zeros(1).
    alpha = jnp.ones((1,), dtype=jnp.float32)
    bias = jnp.zeros((1,), dtype=jnp.float32)
    mask = None

    ref = _reference(x, alpha, bias, eps=1e-5)

    # Encoder forward with no layers == final LayerNormalization (fused path).
    out = encoder_forward(x, mask, layers=(), alpha=alpha, bias=bias, eps=1e-5)
    out = jax.block_until_ready(out)
    assert out.shape == (B, S, H)
    assert jnp.allclose(out, ref, atol=1e-5, rtol=1e-4), "fused path mismatch vs reference"

    # Also exercise the large-shape streamed (phase-axis) path for coverage.
    out2 = layer_normalization(x, alpha, bias, eps=1e-5, force_streamed=True)
    out2 = jax.block_until_ready(out2)
    assert jnp.allclose(out2, ref, atol=1e-5, rtol=1e-4), "streamed path mismatch vs reference"

    print("KERNEL_OK")
</pallas_src>

<mosaic_0001>
module attributes {stable_mosaic.version = 11 : i64} {
  func.func @_fused_kernel(%arg0: i32, %arg1: memref<1xf32, #tpu.memory_space<smem>>, %arg2: memref<1xf32, #tpu.memory_space<smem>>, %arg3: memref<1x8x32xf32, #tpu.memory_space<vmem>>, %arg4: memref<1x8x32xf32, #tpu.memory_space<vmem>>) attributes {dimension_semantics = [#tpu.dimension_semantics<parallel>], iteration_bounds = array<i64: 2>, scalar_prefetch = 0 : i64, scratch_operands = 0 : i64, tpu.core_type = #tpu.core_type<tc>, window_params = [{transform_indices = @transform_0, window_bounds = array<i64: 1>}, {transform_indices = @transform_1, window_bounds = array<i64: 1>}, {transform_indices = @transform_2, window_bounds = array<i64: 1, 8, 32>}, {transform_indices = @transform_3, window_bounds = array<i64: 1, 8, 32>}]} {
    %c0 = arith.constant 0 : index
    %c0_0 = arith.constant 0 : index
    %c0_1 = arith.constant 0 : index
    %0 = vector.load %arg3[%c0, %c0_0, %c0_1] : memref<1x8x32xf32, #tpu.memory_space<vmem>>, vector<1x8x32xf32>
    %cst = arith.constant dense<0.000000e+00> : vector<1x8xf32>
    %1 = vector.multi_reduction <add>, %0, %cst [2] : vector<1x8x32xf32> to vector<1x8xf32>
    %2 = vector.shape_cast %1 : vector<1x8xf32> to vector<1x8x1xf32>
    %cst_2 = arith.constant 3.200000e+01 : f32
    %3 = vector.broadcast %cst_2 : f32 to vector<1x8x1xf32>
    %4 = arith.divf %2, %3 : vector<1x8x1xf32>
    %cst_3 = arith.constant dense<0.000000e+00> : vector<1x32xf32>
    %5 = vector.multi_reduction <add>, %0, %cst_3 [1] : vector<1x8x32xf32> to vector<1x32xf32>
    %6 = vector.shape_cast %5 : vector<1x32xf32> to vector<1x1x32xf32>
    %cst_4 = arith.constant 8.000000e+00 : f32
    %7 = vector.broadcast %cst_4 : f32 to vector<1x1x32xf32>
    %8 = arith.divf %6, %7 : vector<1x1x32xf32>
    %9 = vector.broadcast %8 : vector<1x1x32xf32> to vector<1x8x32xf32>
    %10 = arith.subf %0, %9 : vector<1x8x32xf32>
    %11 = arith.mulf %10, %10 : vector<1x8x32xf32>
    %cst_5 = arith.constant dense<0.000000e+00> : vector<1x32xf32>
    %12 = vector.multi_reduction <add>, %11, %cst_5 [1] : vector<1x8x32xf32> to vector<1x32xf32>
    %13 = vector.shape_cast %12 : vector<1x32xf32> to vector<1x1x32xf32>
    %cst_6 = arith.constant 7.000000e+00 : f32
    %14 = vector.broadcast %cst_6 : f32 to vector<1x1x32xf32>
    %15 = arith.divf %13, %14 : vector<1x1x32xf32>
    %16 = math.sqrt %15 : vector<1x1x32xf32>
    %cst_7 = arith.constant 9.99999974E-6 : f32
    %17 = vector.broadcast %cst_7 : f32 to vector<1x1x32xf32>
    %18 = arith.addf %16, %17 : vector<1x1x32xf32>
    %19 = tpu.reciprocal %18 {approx = true} : vector<1x1x32xf32> -> vector<1x1x32xf32>
    %20 = arith.mulf %18, %19 : vector<1x1x32xf32>
    %cst_8 = arith.constant 2.000000e+00 : f32
    %21 = vector.broadcast %cst_8 : f32 to vector<1x1x32xf32>
    %22 = arith.subf %21, %20 : vector<1x1x32xf32>
    %23 = arith.mulf %19, %22 : vector<1x1x32xf32>
    %24 = arith.mulf %18, %23 : vector<1x1x32xf32>
    %cst_9 = arith.constant 2.000000e+00 : f32
    %25 = vector.broadcast %cst_9 : f32 to vector<1x1x32xf32>
    %26 = arith.subf %25, %24 : vector<1x1x32xf32>
    %27 = arith.mulf %23, %26 : vector<1x1x32xf32>
    %c0_10 = arith.constant 0 : index
    %28 = memref.load %arg1[%c0_10] : memref<1xf32, #tpu.memory_space<smem>>
    %29 = vector.broadcast %28 : f32 to vector<1x1x32xf32>
    %30 = arith.mulf %29, %27 : vector<1x1x32xf32>
    %31 = vector.broadcast %4 : vector<1x8x1xf32> to vector<1x8x32xf32>
    %32 = arith.subf %0, %31 : vector<1x8x32xf32>
    %33 = vector.broadcast %30 : vector<1x1x32xf32> to vector<1x8x32xf32>
    %34 = arith.mulf %32, %33 : vector<1x8x32xf32>
    %c0_11 = arith.constant 0 : index
    %35 = memref.load %arg2[%c0_11] : memref<1xf32, #tpu.memory_space<smem>>
    %36 = vector.broadcast %35 : f32 to vector<1x8x32xf32>
    %37 = arith.addf %34, %36 : vector<1x8x32xf32>
    %c0_12 = arith.constant 0 : index
    %c0_13 = arith.constant 0 : index
    %c0_14 = arith.constant 0 : index
    %38 = vector.load %arg4[%c0_12, %c0_13, %c0_14] : memref<1x8x32xf32, #tpu.memory_space<vmem>>, vector<1x8x32xf32>
    tpu.vector_store %arg4[%c0_12, %c0_13, %c0_14], %37 {strides = array<i32>} : memref<1x8x32xf32, #tpu.memory_space<vmem>>, vector<1x8x32xf32>,
    return
  }
  func.func @transform_0(%arg0: i32) -> i32 {
    %c0_i32 = arith.constant 0 : i32
    %c0_i32_0 = arith.constant 0 : i32
    return %c0_i32 : i32
  }
  func.func @transform_1(%arg0: i32) -> i32 {
    %c0_i32 = arith.constant 0 : i32
    %c0_i32_0 = arith.constant 0 : i32
    return %c0_i32 : i32
  }
  func.func @transform_2(%arg0: i32) -> (i32, i32, i32) {
    %c0_i32 = arith.constant 0 : i32
    %c0_i32_0 = arith.constant 0 : i32
    %c0_i32_1 = arith.constant 0 : i32
    return %arg0, %c0_i32, %c0_i32_0 : i32, i32, i32
  }
  func.func @transform_3(%arg0: i32) -> (i32, i32, i32) {
    %c0_i32 = arith.constant 0 : i32
    %c0_i32_0 = arith.constant 0 : i32
    %c0_i32_1 = arith.constant 0 : i32
    return %arg0, %c0_i32, %c0_i32_0 : i32, i32, i32
  }
}

</mosaic_0001>

<llo_original>
// kernel: tpu_custom_call.1
$region0: #{tpu_custom_call.1}
  #allocation0 [shape = 'u32[]', space=smem, size = 0x4, offset = 0x4, fixed_abs, tag = 'smem constant byte address 0x4 - core index']
  #allocation1 [shape = 'u32[144,128]{1,0:T(1,128)}', space=vmem, size = 0x12000, scoped, tag = 'internal scratch']
  #allocation2 [shape = 'f32[1]{0:T(128)S(6)}', space=smem, size = 0x200, scoped, tag = 'scoped memory for tpu_custom_call.1']
  #allocation3 [shape = 'f32[1]{0:T(128)S(6)}', space=smem, size = 0x200, scoped, tag = 'scoped memory for tpu_custom_call.1']
  %s0 = inlined_call_operand.<no memory space> [shape: f32[1], index: 0, kind: input, shape index: {}]
  %s1 = inlined_call_operand.<no memory space> [shape: f32[1], index: 1, kind: input, shape index: {}]
  %s2 = inlined_call_operand.hbm [shape: f32[2,8,32], index: 2, kind: input, shape index: {}]
  %s3 = inlined_call_operand.hbm [shape: f32[2,8,32], index: 3, kind: output, shape index: {}]
  %s4 = sld [smem:[#allocation0]]
  $region49: #{tpu_custom_call.1} parent=0
    _
  %s6 = ssub.s32 1, %s4
  %s7 = scalar_select 0, %s6, %s4
  %8 = sst [smem:[#allocation2]] %s0
  %9 = sst [smem:[#allocation3]] %s1
  $region1: #{tpu_custom_call.1} parent=0
    #allocation4 [shape = 'u8[8192]{0}', space=vmem, size = 0x2000, scoped, tag = 'input window, operand 2']
    #allocation5 [shape = 's32[2]{0}', space=sflag, size = 0x8, scoped, tag = 'scoped memory for tpu_custom_call.1']
    #allocation6 [shape = 's32[2]{0}', space=sflag, size = 0x8, scoped, tag = 'scoped memory for tpu_custom_call.1']
    #allocation7 [shape = 'u8[8192]{0}', space=vmem, size = 0x2000, scoped, tag = 'output window, operand 0']
    %10 = vsyncpa [#allocation5], 0
    %s11 = scalar_lea.sflag [#allocation5], 1
    %12 = vsyncpa %s11, 0
    %13 = vsyncpa [#allocation6], 0
    %s14 = scalar_lea.sflag [#allocation6], 1
    %15 = vsyncpa %s14, 0
    loop: start=0, step=1, limit=4
    $region2: #{tpu_custom_call.1} parent=1 // loop_pre_header
      _
    $region3: #{tpu_custom_call.1} parent=1 // loop_header
      %s17 = sphi 0, %s21
      %p18 = scmp.ge.s32.totalorder %s17, 4
      %s25 = sphi 0, %s25
      %s27 = sphi 0, %s25
      %s28 = sphi 0, %s27
      %s42 = sphi 0, %s28
      %s46 = sphi 0, %s46
      %s48 = sphi 0, %s46
      %s49 = sphi 0, %s48
      %s63 = sphi 0, %s49
      %s69 = sphi 0, %s71
      %s72 = sphi 0, %s69
      %s73 = sphi 0, %s72
      %s89 = sphi 0, %s73
      %s95 = sphi 0, %s97
      %s98 = sphi 0, %s95
      %s99 = sphi 0, %s98
      %s115 = sphi 0, %s99
    $region4: #{tpu_custom_call.1} parent=1 // loop_header_branch
      %20 = sbr.rel (%p18) target = $region8
    $region5: #{tpu_custom_call.1} parent=1 // loop_body
      %s22 = ssub.s32 %s17, 1
      %s23 = ssub.s32 %s17, 2
      %s24 = sadd.s32 %s17, 1
      %s26 = sadd.s32 %s25, 1
      %p29 = scmp.eq.s32.totalorder %s17, 1
      %p30 = scmp.ne.s32.totalorder %s25, %s27
      %p31 = scmp.eq.s32.totalorder %s17, 0
      %p32 = por %p30, %p31
      %p33 = scmp.ne.s32.totalorder %s25, %s27
      %p34 = scmp.eq.s32.totalorder %s22, 1
      %p35 = por %p33, %p34
      %p36 = scmp.ne.s32.totalorder %s27, %s28
      %p37 = scmp.eq.s32.totalorder %s22, 0
      %p38 = por %p36, %p37
      %p39 = scmp.ne.s32.totalorder %s27, %s28
      %p40 = scmp.eq.s32.totalorder %s23, 1
      %p41 = por %p39, %p40
      %p43 = scmp.ne.s32.totalorder %s28, %s42
      %p44 = scmp.eq.s32.totalorder %s23, 0
      %p45 = por %p43, %p44
      %s47 = sadd.s32 %s46, 1
      %p50 = scmp.eq.s32.totalorder %s17, 1
      %p51 = scmp.ne.s32.totalorder %s46, %s48
      %p52 = scmp.eq.s32.totalorder %s17, 0
      %p53 = por %p51, %p52
      %p54 = scmp.ne.s32.totalorder %s46, %s48
      %p55 = scmp.eq.s32.totalorder %s22, 1
      %p56 = por %p54, %p55
      %p57 = scmp.ne.s32.totalorder %s48, %s49
      %p58 = scmp.eq.s32.totalorder %s22, 0
      %p59 = por %p57, %p58
      %p60 = scmp.ne.s32.totalorder %s48, %s49
      %p61 = scmp.eq.s32.totalorder %s23, 1
      %p62 = por %p60, %p61
      %p64 = scmp.ne.s32.totalorder %s49, %s63
      %p65 = scmp.eq.s32.totalorder %s23, 0
      %p66 = por %p64, %p65
      %s67 = ssub.s32 %s17, %s24
      %p68 = scmp.eq.s32.totalorder %s67, 0
      %s70 = sadd.s32 %s69, 1
      %s71 = scalar_select %p68, %s69, %s70
      %p74 = pneg %p68
      %p75 = scmp.eq.s32.totalorder %s17, 1
      %p76 = por %p74, %p75
      %p77 = scmp.ne.s32.totalorder %s69, %s72
      %p78 = scmp.eq.s32.totalorder %s17, 0
      %p79 = por %p77, %p78
      %p80 = scmp.ne.s32.totalorder %s69, %s72
      %p81 = scmp.eq.s32.totalorder %s22, 1
      %p82 = por %p80, %p81
      %p83 = scmp.ne.s32.totalorder %s72, %s73
      %p84 = scmp.eq.s32.totalorder %s22, 0
      %p85 = por %p83, %p84
      %p86 = scmp.ne.s32.totalorder %s72, %s73
      %p87 = scmp.eq.s32.totalorder %s23, 1
      %p88 = por %p86, %p87
      %p90 = scmp.ne.s32.totalorder %s73, %s89
      %p91 = scmp.eq.s32.totalorder %s23, 0
      %p92 = por %p90, %p91
      %s93 = ssub.s32 %s17, %s24
      %p94 = scmp.eq.s32.totalorder %s93, 0
      %s96 = sadd.s32 %s95, 1
      %s97 = scalar_select %p94, %s95, %s96
      %p100 = pneg %p94
      %p101 = scmp.eq.s32.totalorder %s17, 1
      %p102 = por %p100, %p101
      %p103 = scmp.ne.s32.totalorder %s95, %s98
      %p104 = scmp.eq.s32.totalorder %s17, 0
      %p105 = por %p103, %p104
      %p106 = scmp.ne.s32.totalorder %s95, %s98
      %p107 = scmp.eq.s32.totalorder %s22, 1
      %p108 = por %p106, %p107
      %p109 = scmp.ne.s32.totalorder %s98, %s99
      %p110 = scmp.eq.s32.totalorder %s22, 0
      %p111 = por %p109, %p110
      %p112 = scmp.ne.s32.totalorder %s98, %s99
      %p113 = scmp.eq.s32.totalorder %s23, 1
      %p114 = por %p112, %p113
      %p116 = scmp.ne.s32.totalorder %s99, %s115
      %p117 = scmp.eq.s32.totalorder %s23, 0
      %p118 = por %p116, %p117
      %p119 = scmp.le.s32.totalorder 1, %s17
      %p120 = scmp.lt.s32.totalorder %s17, 3
      %p121 = pnand %p119, %p120
      %p122 = pneg %p121
      // Predicated region
      $region9: #{tpu_custom_call.1} parent=5 // pred_check
        _
      $region10: #{tpu_custom_call.1} parent=5 // pred_check_branch
        %124 = sbr.rel (%p121) target = $region12
      $region11: #{tpu_custom_call.1} parent=5 // pred_region
        %s125 = ssub.s32 %s17, 1
        // Predicated region
        $region13: #{tpu_custom_call.1} parent=11 // pred_check
          %p126 = pneg %p38
        $region14: #{tpu_custom_call.1} parent=11 // pred_check_branch
          %128 = sbr.rel (%p126) target = $region16
        $region15: #{tpu_custom_call.1} parent=11 // pred_region
          _
        $region16: #{tpu_custom_call.1} parent=11 // pred_fallthru
          _
        // Predicated region
        $region17: #{tpu_custom_call.1} parent=11 // pred_check
          %p129 = pneg %p59
        $region18: #{tpu_custom_call.1} parent=11 // pred_check_branch
          %131 = sbr.rel (%p129) target = $region20
        $region19: #{tpu_custom_call.1} parent=11 // pred_region
          _
        $region20: #{tpu_custom_call.1} parent=11 // pred_fallthru
          _
      $region12: #{tpu_custom_call.1} parent=5 // pred_fallthru
        _
      %p132 = scmp.lt.s32.totalorder %s17, 2
      // Predicated region
      $region21: #{tpu_custom_call.1} parent=5 // pred_check
        %p133 = pneg %p132
      $region22: #{tpu_custom_call.1} parent=5 // pred_check_branch
        %135 = sbr.rel (%p133) target = $region24
      $region23: #{tpu_custom_call.1} parent=5 // pred_region
        // Predicated region
        $region25: #{tpu_custom_call.1} parent=23 // pred_check
          %p136 = pneg %p79
        $region26: #{tpu_custom_call.1} parent=23 // pred_check_branch
          %138 = sbr.rel (%p136) target = $region28
        $region27: #{tpu_custom_call.1} parent=23 // pred_region
          %s139 = sand.u32 %s69, 1
          %s140 = scalar_lea.sflag [#allocation5], %s139
          %s141 = sand.u32 %s69, 1
          %s142 = smul.addr %s141, 8
          %s143 = scalar_lea.vmem [#allocation4], %s142
          %s145 = ssub.s32 128, 128
          %146 = vsyncadd %s140, %s145
          %s147 = smul.addr %s17, 128
          %s148 = scalar_lea.hbm %s2, %s147
          %s150 = sshll.u32 %s143, 4
          %s151 = int_to_ptr.vmem [resolvable:$true] %s150
          %153 = dma.hbm_to_vmem [thread:$0]  %s148, 128, %s151, %s140
        $region28: #{tpu_custom_call.1} parent=23 // pred_fallthru
          _
      $region24: #{tpu_custom_call.1} parent=5 // pred_fallthru
        _
      %p154 = scmp.le.s32.totalorder 1, %s17
      %p155 = scmp.lt.s32.totalorder %s17, 3
      %p156 = pnand %p154, %p155
      %p157 = pneg %p156
      // Predicated region
      $region29: #{tpu_custom_call.1} parent=5 // pred_check
        _
      $region30: #{tpu_custom_call.1} parent=5 // pred_check_branch
        %159 = sbr.rel (%p156) target = $region32
      $region31: #{tpu_custom_call.1} parent=5 // pred_region
        %s160 = ssub.s32 %s17, 1
        %s161 = sand.u32 %s72, 1
        %s162 = scalar_lea.sflag [#allocation5], %s161
        %s163 = sand.u32 %s72, 1
        %s164 = smul.addr %s163, 8
        %s165 = scalar_lea.vmem [#allocation4], %s164
        // Predicated region
        $region33: #{tpu_custom_call.1} parent=31 // pred_check
          %p166 = pneg %p85
        $region34: #{tpu_custom_call.1} parent=31 // pred_check_branch
          %168 = sbr.rel (%p166) target = $region36
        $region35: #{tpu_custom_call.1} parent=31 // pred_region
          %169 = dma.done %s162, 128
        $region36: #{tpu_custom_call.1} parent=31 // pred_fallthru
          _
        %p170 = pneg %p38
        %p171 = pneg %p35
        %p172 = pneg %p59
        %p173 = pneg %p56
        %s174 = sand.u32 %s72, 1
        %s175 = scalar_lea.sflag [#allocation5], %s174
        %s176 = sand.u32 %s72, 1
        %s177 = smul.addr %s176, 8
        %s178 = scalar_lea.vmem [#allocation4], %s177
        %p179 = pneg %p85
        %p180 = pneg %p82
        %p181 = pneg %p111
        %p182 = pneg %p108
        %s183 = sand.u32 %s98, 1
        %s184 = scalar_lea.sflag [#allocation6], %s183
        %s185 = sand.u32 %s98, 1
        %s186 = smul.addr %s185, 8
        %s187 = scalar_lea.vmem [#allocation7], %s186
        %v188 = vld [vmem:[%s165] sm:$0xff]
        %vm189 = vcmask 261120
        %v190 = vsel %vm189, %v188, 0.0
        %191 = vadd.xlane.f32.xlu0 %v190
        %v192 = vpop.xlane.xlu0 %191
        %v193 = vrcp.pop 32.0
        %v194 = vmul.f32 %v192, %v193
        %v195 = vrot.slane %v190, 4
        %v196 = vadd.f32 %v190, %v195
        %v197 = vrot.slane %v196, 2
        %v198 = vadd.f32 %v196, %v197
        %v199 = vrot.slane %v198, 1
        %v200 = vadd.f32 %v198, %v199
        %v201 = vrcp.pop 8.0
        %v202 = vmul.f32 %v200, %v201
        %v203 = vsub.f32 %v188, %v202
        %v204 = vmul.f32 %v203, %v203
        %v205 = vsel %vm189, %v204, 0.0
        %v206 = vrot.slane %v205, 4
        %v207 = vadd.f32 %v205, %v206
        %v208 = vrot.slane %v207, 2
        %v209 = vadd.f32 %v207, %v208
        %v210 = vrot.slane %v209, 1
        %v211 = vadd.f32 %v209, %v210
        %v212 = vrcp.pop 7.0
        %v213 = vmul.f32 %v211, %v212
        %v214 = vrsqrt.pop %v213
        %v215 = vmul.f32 %v213, %v214
        %vm216 = vcmp.eq.f32.partialorder %v213, inf
        %v217 = vsel %vm216, %v213, %v215
        %vm218 = vcmp.eq.f32.partialorder %v213, 0.0
        %v219 = vand.u32 %v213, 2147483648
        %v220 = vsel %vm218, %v219, %v217
        %v221 = vadd.f32 %v220, 1e-05
        %v222 = vrcp.pop %v221
        %v223 = vmul.f32 %v221, %v222
        %v224 = vsub.f32 2.0, %v223
        %v225 = vmul.f32 %v222, %v224
        %v226 = vmul.f32 %v221, %v225
        %v227 = vsub.f32 2.0, %v226
        %v228 = vmul.f32 %v225, %v227
        %s229 = sld [smem:[#allocation2]]
        %v230 = vstv %s229
        %v231 = vmul.f32 %v230, %v228
        %v232 = vsub.f32 %v188, %v194
        %v233 = vmul.f32 %v232, %v231
        %s234 = sld [smem:[#allocation3]]
        %v235 = vstv %s234
        %v236 = vadd.f32 %v233, %v235
        %237 = vst.msk [vmem:[%s187] sm:$0xff] %vm189, %v236
        %s238 = sand.u32 %s98, 1
        %s239 = scalar_lea.sflag [#allocation6], %s238
        %s240 = sand.u32 %s98, 1
        %s241 = smul.addr %s240, 8
        %s242 = scalar_lea.vmem [#allocation7], %s241
        // Predicated region
        $region37: #{tpu_custom_call.1} parent=31 // pred_check
          %p243 = pneg %p108
        $region38: #{tpu_custom_call.1} parent=31 // pred_check_branch
          %245 = sbr.rel (%p243) target = $region40
        $region39: #{tpu_custom_call.1} parent=31 // pred_region
          %s247 = ssub.s32 128, 128
          %248 = vsyncadd %s239, %s247
          %s249 = smul.addr %s22, 128
          %s250 = scalar_lea.hbm %s3, %s249
          %s252 = sshll.u32 %s242, 4
          %s253 = int_to_ptr.vmem [resolvable:$true] %s252
          %255 = dma.vmem_to_hbm [thread:$0]  %s253, 128, %s250, %s239
        $region40: #{tpu_custom_call.1} parent=31 // pred_fallthru
          _
      $region32: #{tpu_custom_call.1} parent=5 // pred_fallthru
        _
      %p256 = scmp.le.s32.totalorder 2, %s17
      // Predicated region
      $region41: #{tpu_custom_call.1} parent=5 // pred_check
        %p257 = pneg %p256
      $region42: #{tpu_custom_call.1} parent=5 // pred_check_branch
        %259 = sbr.rel (%p257) target = $region44
      $region43: #{tpu_custom_call.1} parent=5 // pred_region
        %s260 = ssub.s32 %s17, 2
        // Predicated region
        $region45: #{tpu_custom_call.1} parent=43 // pred_check
          %p261 = pneg %p114
        $region46: #{tpu_custom_call.1} parent=43 // pred_check_branch
          %263 = sbr.rel (%p261) target = $region48
        $region47: #{tpu_custom_call.1} parent=43 // pred_region
          %s264 = sand.u32 %s99, 1
          %s265 = scalar_lea.sflag [#allocation6], %s264
          %s266 = sand.u32 %s99, 1
          %s267 = smul.addr %s266, 8
          %s268 = scalar_lea.vmem [#allocation7], %s267
          %269 = dma.done %s265, 128
        $region48: #{tpu_custom_call.1} parent=43 // pred_fallthru
          _
      $region44: #{tpu_custom_call.1} parent=5 // pred_fallthru
        _
    $region6: #{tpu_custom_call.1} parent=1 // loop_footer
      %s21 = sadd.s32 1, %s17
    $region7: #{tpu_custom_call.1} parent=1 // loop_footer_branch
      %16 = sbr.rel target = $region3
    $region8: #{tpu_custom_call.1} parent=1 // loop_exit
      _
    %270 = vsyncpa [#allocation5], 1
    %s271 = scalar_lea.sflag [#allocation5], 1
    %272 = vsyncpa %s271, 1
    %273 = vsyncpa [#allocation6], 1
    %s274 = scalar_lea.sflag [#allocation6], 1
    %275 = vsyncpa %s274, 1

</llo_original>
